<compile_context>
chip_gen: v7x
topology: tpu7x:2x2x1
jax: 0.10.0
libtpu: 0.0.40
codegen_flags: <defaults>
</compile_context>

<pallas_src>
import jax
import jax.numpy as jnp
from jax.experimental import pallas as pl
from jax.experimental.pallas import tpu as pltpu


def _abs_pos_emb_kernel(q_ref, emb_ref, o_ref):
    # q_ref   : (TM, D)   row tile of flattened queries
    # emb_ref : (D, TN)   column tile of pre-built, pre-transposed pos emb
    # o_ref   : (TM, TN)  logits tile (lane-dense last dim)
    o_ref[...] = jnp.dot(
        q_ref[...], emb_ref[...], preferred_element_type=jnp.float32
    ).astype(o_ref.dtype)


def _choose_tiles(m_rows, j128, d, itemsize):
    """Pick (tm, tn): big lane-dense tiles, >=2 M tiles when possible,
    double-buffered VMEM footprint under a conservative budget."""
    budget = 24 * 1024 * 1024  # conservative; fits all chips (v7x phys 64 MiB)

    tn = min(j128, 2048)  # lane-dense (multiple of 128), capped

    tm = 1024
    while tm > 8 and m_rows < 2 * tm:
        tm //= 2
    tm = max(tm, 8)

    def vmem_bytes(tm_, tn_):
        # q tile + emb tile + out tile, each double-buffered by the pipeline
        return 2 * itemsize * (tm_ * d + d * tn_ + tm_ * tn_)

    while vmem_bytes(tm, tn) > budget and (tm > 128 or tn > 128):
        if tm >= tn and tm > 128:
            tm //= 2
        elif tn > 128:
            tn //= 2
        else:
            tm //= 2
    return tm, tn


def abs_pos_emb(q, height_emb, width_emb):
    """q: (B, HEADS, I, D); height_emb: (H, D); width_emb: (W, D).

    Returns logits: (B, HEADS, I, H*W), matching
    einsum('b h i d, j d -> b h i j', q, emb).
    """
    B, HEADS, I, D = q.shape
    H = height_emb.shape[0]
    W = width_emb.shape[0]
    J = H * W
    M = B * HEADS * I

    # ---- build the embedding directly in transposed (D, J) layout ----
    # emb_t[d, h*W + w] = height[h, d] + width[w, d]
    emb_t = (
        height_emb.T[:, :, None] + width_emb.T[:, None, :]
    ).reshape(D, J).astype(q.dtype)

    itemsize = jnp.dtype(q.dtype).itemsize
    J128 = ((J + 127) // 128) * 128
    tm, tn = _choose_tiles(M, J128, D, itemsize)

    # ---- lane-dense output: pad J up to a multiple of the J tile ----
    J_pad = ((J128 + tn - 1) // tn) * tn
    if J_pad != J:
        emb_t = jnp.pad(emb_t, ((0, 0), (0, J_pad - J)))

    # ---- collapse the grid: one (M, D) x (D, J_pad) GEMM, tiled (M, J) ----
    M_pad = ((M + tm - 1) // tm) * tm
    q_flat = q.reshape(M, D)
    if M_pad != M:
        q_flat = jnp.pad(q_flat, ((0, M_pad - M), (0, 0)))

    grid = (M_pad // tm, J_pad // tn)

    out = pl.pallas_call(
        _abs_pos_emb_kernel,
        out_shape=jax.ShapeDtypeStruct((M_pad, J_pad), q.dtype),
        grid_spec=pltpu.PrefetchScalarGridSpec(
            num_scalar_prefetch=0,
            grid=grid,
            in_specs=[
                pl.BlockSpec((tm, D), lambda m, n: (m, 0)),   # q row tile
                pl.BlockSpec((D, tn), lambda m, n: (0, n)),   # emb col tile
            ],
            out_specs=pl.BlockSpec((tm, tn), lambda m, n: (m, n)),
        ),
        compiler_params=pltpu.CompilerParams(
            # no reduction axis (D is carried whole) -> both axes independent
            dimension_semantics=("parallel", "parallel"),
            # explicit limit with headroom vs v7x's 64 MiB physical VMEM;
            # also comfortably raises v5e's 16 MiB default scoped limit.
            vmem_limit_bytes=48 * 1024 * 1024,
        ),
    )(q_flat, emb_t)

    out = out[:M, :J]
    return out.reshape(B, HEADS, I, J)


if __name__ == "__main__":
    # Small, module-consistent shapes:
    #   fmap_size = 8  -> H = W = 8, so I = J = 64
    #   dim_head  = 32, batch = 2, heads = 4
    fmap_size = 8
    dim_head = 32
    batch = 2
    heads = 4

    H = W = fmap_size
    I = H * W

    key = jax.random.PRNGKey(0)
    k_h, k_w, k_q = jax.random.split(key, 3)

    scale = dim_head ** (-0.5)
    height_emb = jax.random.normal(k_h, (H, dim_head), dtype=jnp.float32) * scale
    width_emb = jax.random.normal(k_w, (W, dim_head), dtype=jnp.float32) * scale

    q = jax.random.normal(k_q, (batch, heads, I, dim_head), dtype=jnp.float32)

    logits = abs_pos_emb(q, height_emb, width_emb)
    logits = jax.block_until_ready(logits)

    # Reference (pure JAX) for sanity check.
    emb_ref = (height_emb[:, None, :] + width_emb[None, :, :]).reshape(
        H * W, dim_head
    )
    logits_ref = jnp.einsum("bhid,jd->bhij", q, emb_ref)

    assert logits.shape == (batch, heads, I, H * W)
    assert jnp.allclose(logits, logits_ref, atol=1e-5, rtol=1e-5)

    print("KERNEL_OK")
</pallas_src>

<mosaic_0001>
module attributes {stable_mosaic.version = 11 : i64} {
  func.func @_abs_pos_emb_kernel(%arg0: i32, %arg1: i32, %arg2: memref<256x32xf32, #tpu.memory_space<vmem>>, %arg3: memref<32x128xf32, #tpu.memory_space<vmem>>, %arg4: memref<256x128xf32, #tpu.memory_space<vmem>>) attributes {dimension_semantics = [#tpu.dimension_semantics<parallel>, #tpu.dimension_semantics<parallel>], iteration_bounds = array<i64: 2, 1>, scalar_prefetch = 0 : i64, scratch_operands = 0 : i64, tpu.core_type = #tpu.core_type<tc>, window_params = [{transform_indices = @transform_0, window_bounds = array<i64: 256, 32>}, {transform_indices = @transform_1, window_bounds = array<i64: 32, 128>}, {transform_indices = @transform_2, window_bounds = array<i64: 256, 128>}]} {
    %c0 = arith.constant 0 : index
    %c0_0 = arith.constant 0 : index
    %0 = vector.load %arg2[%c0, %c0_0] : memref<256x32xf32, #tpu.memory_space<vmem>>, vector<256x32xf32>
    %c0_1 = arith.constant 0 : index
    %c0_2 = arith.constant 0 : index
    %1 = vector.load %arg3[%c0_1, %c0_2] : memref<32x128xf32, #tpu.memory_space<vmem>>, vector<32x128xf32>
    %cst = arith.constant dense<0.000000e+00> : vector<256x128xf32>
    %2 = tpu.matmul %0, %1, %cst {dimension_numbers = #tpu.dot_dimension_numbers<[1], [0], [0], [1], [0, 0, 1, 1], [], []>} : vector<256x32xf32>, vector<32x128xf32>, vector<256x128xf32> -> vector<256x128xf32>
    %c0_3 = arith.constant 0 : index
    %c0_4 = arith.constant 0 : index
    %3 = vector.load %arg4[%c0_3, %c0_4] : memref<256x128xf32, #tpu.memory_space<vmem>>, vector<256x128xf32>
    tpu.vector_store %arg4[%c0_3, %c0_4], %2 {strides = array<i32>} : memref<256x128xf32, #tpu.memory_space<vmem>>, vector<256x128xf32>,
    return
  }
  func.func @transform_0(%arg0: i32, %arg1: i32) -> (i32, i32) {
    %c0_i32 = arith.constant 0 : i32
    %c0_i32_0 = arith.constant 0 : i32
    return %arg0, %c0_i32 : i32, i32
  }
  func.func @transform_1(%arg0: i32, %arg1: i32) -> (i32, i32) {
    %c0_i32 = arith.constant 0 : i32
    %c0_i32_0 = arith.constant 0 : i32
    return %c0_i32, %arg1 : i32, i32
  }
  func.func @transform_2(%arg0: i32, %arg1: i32) -> (i32, i32) {
    %c0_i32 = arith.constant 0 : i32
    return %arg0, %arg1 : i32, i32
  }
}

</mosaic_0001>

<llo_original>
// kernel: tpu_custom_call.1
$region0: #{tpu_custom_call.1}
  #allocation0 [shape = 'u32[]', space=smem, size = 0x4, offset = 0x4, fixed_abs, tag = 'smem constant byte address 0x4 - core index']
  #allocation1 [shape = 'u32[144,128]{1,0:T(1,128)}', space=vmem, size = 0x12000, scoped, tag = 'internal scratch']
  %s0 = inlined_call_operand.vmem [shape: f32[512,32], index: 0, kind: input, shape index: {}]
  %s1 = inlined_call_operand.vmem [shape: f32[32,128], index: 1, kind: input, shape index: {}]
  %s2 = inlined_call_operand.hbm [shape: f32[512,128], index: 2, kind: output, shape index: {}]
  %s3 = sld [smem:[#allocation0]]
  $region41: #{tpu_custom_call.1} parent=0
    _
  %s5 = ssub.s32 1, %s3
  %s6 = scalar_select 0, %s5, %s3
  $region1: #{tpu_custom_call.1} parent=0
    #allocation2 [shape = 'u8[262144]{0}', space=vmem, size = 0x40000, scoped, tag = 'output window, operand 0']
    #allocation3 [shape = 's32[2]{0}', space=sflag, size = 0x8, scoped, tag = 'scoped memory for tpu_custom_call.1']
    %7 = vsyncpa [#allocation3], 0
    %s8 = scalar_lea.sflag [#allocation3], 1
    %9 = vsyncpa %s8, 0
    loop: start=0, step=1, limit=4
    $region2: #{tpu_custom_call.1} parent=1 // loop_pre_header
      _
    $region3: #{tpu_custom_call.1} parent=1 // loop_header
      %s11 = sphi 0, %s15
      %p12 = scmp.ge.s32.totalorder %s11, 4
      %s18 = sphi 0, %s30
      %s19 = sphi 0, %s26
      %s20 = sphi 0, %s18
      %s21 = sphi 0, %s19
      %s22 = sphi 0, %s20
      %s23 = sphi 0, %s21
      %s33 = sphi 0, %s35
      %s36 = sphi 0, %s33
      %s37 = sphi 0, %s36
      %s53 = sphi 0, %s37
      %s59 = sphi 0, %s61
      %s62 = sphi 0, %s59
      %s63 = sphi 0, %s62
      %s79 = sphi 0, %s63
      %s87 = sphi 0, %s89
      %s90 = sphi 0, %s87
      %s91 = sphi 0, %s90
      %s107 = sphi 0, %s91
    $region4: #{tpu_custom_call.1} parent=1 // loop_header_branch
      %14 = sbr.rel (%p12) target = $region8
    $region5: #{tpu_custom_call.1} parent=1 // loop_body
      %s16 = ssub.s32 %s11, 1
      %s17 = ssub.s32 %s11, 2
      %s24 = sadd.s32 1, %s19
      %p25 = scmp.ge.s32.totalorder %s24, 1
      %s26 = scalar_select %p25, 0, %s24
      %s27 = sadd.s32 1, %s18
      %s28 = scalar_select %p25, %s27, %s18
      %p29 = scmp.ge.s32.totalorder %s28, 2
      %s30 = scalar_select %p29, 0, %s28
      %s31 = ssub.s32 %s18, %s30
      %p32 = scmp.eq.s32.totalorder %s31, 0
      %s34 = sadd.s32 %s33, 1
      %s35 = scalar_select %p32, %s33, %s34
      %p38 = pneg %p32
      %p39 = scmp.eq.s32.totalorder %s11, 1
      %p40 = por %p38, %p39
      %p41 = scmp.ne.s32.totalorder %s33, %s36
      %p42 = scmp.eq.s32.totalorder %s11, 0
      %p43 = por %p41, %p42
      %p44 = scmp.ne.s32.totalorder %s33, %s36
      %p45 = scmp.eq.s32.totalorder %s16, 1
      %p46 = por %p44, %p45
      %p47 = scmp.ne.s32.totalorder %s36, %s37
      %p48 = scmp.eq.s32.totalorder %s16, 0
      %p49 = por %p47, %p48
      %p50 = scmp.ne.s32.totalorder %s36, %s37
      %p51 = scmp.eq.s32.totalorder %s17, 1
      %p52 = por %p50, %p51
      %p54 = scmp.ne.s32.totalorder %s37, %s53
      %p55 = scmp.eq.s32.totalorder %s17, 0
      %p56 = por %p54, %p55
      %s57 = ssub.s32 %s19, %s26
      %p58 = scmp.eq.s32.totalorder %s57, 0
      %s60 = sadd.s32 %s59, 1
      %s61 = scalar_select %p58, %s59, %s60
      %p64 = pneg %p58
      %p65 = scmp.eq.s32.totalorder %s11, 1
      %p66 = por %p64, %p65
      %p67 = scmp.ne.s32.totalorder %s59, %s62
      %p68 = scmp.eq.s32.totalorder %s11, 0
      %p69 = por %p67, %p68
      %p70 = scmp.ne.s32.totalorder %s59, %s62
      %p71 = scmp.eq.s32.totalorder %s16, 1
      %p72 = por %p70, %p71
      %p73 = scmp.ne.s32.totalorder %s62, %s63
      %p74 = scmp.eq.s32.totalorder %s16, 0
      %p75 = por %p73, %p74
      %p76 = scmp.ne.s32.totalorder %s62, %s63
      %p77 = scmp.eq.s32.totalorder %s17, 1
      %p78 = por %p76, %p77
      %p80 = scmp.ne.s32.totalorder %s63, %s79
      %p81 = scmp.eq.s32.totalorder %s17, 0
      %p82 = por %p80, %p81
      %s83 = ssub.s32 %s18, %s30
      %s84 = ssub.s32 %s19, %s26
      %s85 = sor.u32 %s83, %s84
      %p86 = scmp.eq.s32.totalorder %s85, 0
      %s88 = sadd.s32 %s87, 1
      %s89 = scalar_select %p86, %s87, %s88
      %p92 = pneg %p86
      %p93 = scmp.eq.s32.totalorder %s11, 1
      %p94 = por %p92, %p93
      %p95 = scmp.ne.s32.totalorder %s87, %s90
      %p96 = scmp.eq.s32.totalorder %s11, 0
      %p97 = por %p95, %p96
      %p98 = scmp.ne.s32.totalorder %s87, %s90
      %p99 = scmp.eq.s32.totalorder %s16, 1
      %p100 = por %p98, %p99
      %p101 = scmp.ne.s32.totalorder %s90, %s91
      %p102 = scmp.eq.s32.totalorder %s16, 0
      %p103 = por %p101, %p102
      %p104 = scmp.ne.s32.totalorder %s90, %s91
      %p105 = scmp.eq.s32.totalorder %s17, 1
      %p106 = por %p104, %p105
      %p108 = scmp.ne.s32.totalorder %s91, %s107
      %p109 = scmp.eq.s32.totalorder %s17, 0
      %p110 = por %p108, %p109
      %p111 = scmp.le.s32.totalorder 1, %s11
      %p112 = scmp.lt.s32.totalorder %s11, 3
      %p113 = pnand %p111, %p112
      %p114 = pneg %p113
      // Predicated region
      $region9: #{tpu_custom_call.1} parent=5 // pred_check
        _
      $region10: #{tpu_custom_call.1} parent=5 // pred_check_branch
        %116 = sbr.rel (%p113) target = $region12
      $region11: #{tpu_custom_call.1} parent=5 // pred_region
        %s117 = ssub.s32 %s11, 1
        // Predicated region
        $region13: #{tpu_custom_call.1} parent=11 // pred_check
          %p118 = pneg %p75
        $region14: #{tpu_custom_call.1} parent=11 // pred_check_branch
          %120 = sbr.rel (%p118) target = $region16
        $region15: #{tpu_custom_call.1} parent=11 // pred_region
          %p121 = scmp.lt.s32.totalorder %s21, 0
          %s122 = scalar_select %p121, %s21, 0
          %s123 = smul.addr %s122, 8
          %s124 = scalar_lea.vmem %s1, %s123
        $region16: #{tpu_custom_call.1} parent=11 // pred_fallthru
          _
      $region12: #{tpu_custom_call.1} parent=5 // pred_fallthru
        _
      %p125 = scmp.lt.s32.totalorder %s11, 2
      // Predicated region
      $region17: #{tpu_custom_call.1} parent=5 // pred_check
        %p126 = pneg %p125
      $region18: #{tpu_custom_call.1} parent=5 // pred_check_branch
        %128 = sbr.rel (%p126) target = $region20
      $region19: #{tpu_custom_call.1} parent=5 // pred_region
        // Predicated region
        $region21: #{tpu_custom_call.1} parent=19 // pred_check
          %p129 = pneg %p43
        $region22: #{tpu_custom_call.1} parent=19 // pred_check_branch
          %131 = sbr.rel (%p129) target = $region24
        $region23: #{tpu_custom_call.1} parent=19 // pred_region
          %s132 = smul.u32 32, %s18
          %p133 = scmp.lt.s32.totalorder %s132, 63
          %s134 = scalar_select %p133, %s132, 63
          %s135 = smul.addr %s134, 8
          %s136 = scalar_lea.vmem %s0, %s135
          %s137 = smul.u32 32, %s18
        $region24: #{tpu_custom_call.1} parent=19 // pred_fallthru
          _
      $region20: #{tpu_custom_call.1} parent=5 // pred_fallthru
        _
      %p138 = scmp.le.s32.totalorder 1, %s11
      %p139 = scmp.lt.s32.totalorder %s11, 3
      %p140 = pnand %p138, %p139
      %p141 = pneg %p140
      // Predicated region
      $region25: #{tpu_custom_call.1} parent=5 // pred_check
        _
      $region26: #{tpu_custom_call.1} parent=5 // pred_check_branch
        %143 = sbr.rel (%p140) target = $region28
      $region27: #{tpu_custom_call.1} parent=5 // pred_region
        %s144 = ssub.s32 %s11, 1
        %s145 = smul.u32 32, %s20
        %p146 = scmp.lt.s32.totalorder %s145, 63
        %s147 = scalar_select %p146, %s145, 63
        %s148 = smul.addr %s147, 8
        %s149 = scalar_lea.vmem %s0, %s148
        %p150 = pneg %p49
        %p151 = pneg %p46
        %p152 = scmp.lt.s32.totalorder %s21, 0
        %s153 = scalar_select %p152, %s21, 0
        %s154 = smul.addr %s153, 8
        %s155 = scalar_lea.vmem %s1, %s154
        %p156 = pneg %p75
        %p157 = pneg %p72
        %p158 = pneg %p103
        %p159 = pneg %p100
        %s160 = sand.u32 %s90, 1
        %s161 = scalar_lea.sflag [#allocation3], %s160
        %s162 = sand.u32 %s90, 1
        %s163 = smul.addr %s162, 256
        %s164 = scalar_lea.vmem [#allocation2], %s163
        %s165 = smul.u32 32, %s20
        %p166 = scmp.lt.s32.totalorder %s165, 63
        %s167 = scalar_select %p166, %s165, 63
        %s168 = smul.addr %s167, 8
        %s169 = scalar_lea.vmem %s0, %s168
        %s170 = smul.u32 32, %s20
        %p171 = scmp.lt.s32.totalorder %s21, 0
        %s172 = scalar_select %p171, %s21, 0
        %s173 = smul.addr %s172, 8
        %s174 = scalar_lea.vmem %s1, %s173
        %s175 = smul.u32 32, %s20
        %v176 = vld [vmem:[%s169] sm:$0xff]
        %v177 = vld [vmem:[%s169 + $0x8] sm:$0xff]
        %v178 = vld [vmem:[%s169 + $0x10] sm:$0xff]
        %v179 = vld [vmem:[%s169 + $0x18] sm:$0xff]
        %v180 = vld [vmem:[%s169 + $0x20] sm:$0xff]
        %v181 = vld [vmem:[%s169 + $0x28] sm:$0xff]
        %v182 = vld [vmem:[%s169 + $0x30] sm:$0xff]
        %v183 = vld [vmem:[%s169 + $0x38] sm:$0xff]
        %v184 = vld [vmem:[%s169 + $0x40] sm:$0xff]
        %v185 = vld [vmem:[%s169 + $0x48] sm:$0xff]
        %v186 = vld [vmem:[%s169 + $0x50] sm:$0xff]
        %v187 = vld [vmem:[%s169 + $0x58] sm:$0xff]
        %v188 = vld [vmem:[%s169 + $0x60] sm:$0xff]
        %v189 = vld [vmem:[%s169 + $0x68] sm:$0xff]
        %v190 = vld [vmem:[%s169 + $0x70] sm:$0xff]
        %v191 = vld [vmem:[%s169 + $0x78] sm:$0xff]
        %v192 = vld [vmem:[%s169 + $0x80] sm:$0xff]
        %v193 = vld [vmem:[%s169 + $0x88] sm:$0xff]
        %v194 = vld [vmem:[%s169 + $0x90] sm:$0xff]
        %v195 = vld [vmem:[%s169 + $0x98] sm:$0xff]
        %v196 = vld [vmem:[%s169 + $0xa0] sm:$0xff]
        %v197 = vld [vmem:[%s169 + $0xa8] sm:$0xff]
        %v198 = vld [vmem:[%s169 + $0xb0] sm:$0xff]
        %v199 = vld [vmem:[%s169 + $0xb8] sm:$0xff]
        %v200 = vld [vmem:[%s169 + $0xc0] sm:$0xff]
        %v201 = vld [vmem:[%s169 + $0xc8] sm:$0xff]
        %v202 = vld [vmem:[%s169 + $0xd0] sm:$0xff]
        %v203 = vld [vmem:[%s169 + $0xd8] sm:$0xff]
        %v204 = vld [vmem:[%s169 + $0xe0] sm:$0xff]
        %v205 = vld [vmem:[%s169 + $0xe8] sm:$0xff]
        %v206 = vld [vmem:[%s169 + $0xf0] sm:$0xff]
        %v207 = vld [vmem:[%s169 + $0xf8] sm:$0xff]
        %v208 = vld [vmem:[%s174] sm:$0xff]
        %v209 = vld [vmem:[%s174 + $0x8] sm:$0xff]
        %v210 = vld [vmem:[%s174 + $0x10] sm:$0xff]
        %v211 = vld [vmem:[%s174 + $0x18] sm:$0xff]
        %vm212 = vcmask 261120
        %v214 = vsel %vm212, %v176, 0
        %v217 = vsel %vm212, %v177, 0
        %v220 = vsel %vm212, %v178, 0
        %v223 = vsel %vm212, %v179, 0
        %v226 = vsel %vm212, %v180, 0
        %v229 = vsel %vm212, %v181, 0
        %v232 = vsel %vm212, %v182, 0
        %v235 = vsel %vm212, %v183, 0
        %v238 = vsel %vm212, %v184, 0
        %v241 = vsel %vm212, %v185, 0
        %v244 = vsel %vm212, %v186, 0
        %v247 = vsel %vm212, %v187, 0
        %v250 = vsel %vm212, %v188, 0
        %v253 = vsel %vm212, %v189, 0
        %v256 = vsel %vm212, %v190, 0
        %v259 = vsel %vm212, %v191, 0
        %v262 = vsel %vm212, %v192, 0
        %v265 = vsel %vm212, %v193, 0
        %v268 = vsel %vm212, %v194, 0
        %v271 = vsel %vm212, %v195, 0
        %v274 = vsel %vm212, %v196, 0
        %v277 = vsel %vm212, %v197, 0
        %v280 = vsel %vm212, %v198, 0
        %v283 = vsel %vm212, %v199, 0
        %v286 = vsel %vm212, %v200, 0
        %v289 = vsel %vm212, %v201, 0
        %v292 = vsel %vm212, %v202, 0
        %v295 = vsel %vm212, %v203, 0
        %v298 = vsel %vm212, %v204, 0
        %v301 = vsel %vm212, %v205, 0
        %v304 = vsel %vm212, %v206, 0
        %v307 = vsel %vm212, %v207, 0
        %309 = vmatprep.subr.mxu0 0.0
        %310 = vmatpush1.msra.mxu0 %v208
        %311 = vmatprep.subr.mxu0 0.0
        %312 = vmatpush1.msra.mxu0 %v209
        %313 = vmatprep.subr.mxu0 0.0
        %314 = vmatpush1.msra.mxu0 %v210
        %315 = vmatprep.subr.mxu0 0.0
        %316 = vmatpush1.msra.mxu0 %v211
        %317 = vmatprep.subr.mxu0 0.0
        %318 = vmatpush1.msra.mxu0 0.0
        %319 = vmatprep.subr.mxu0 0.0
        %320 = vmatpush1.msra.mxu0 0.0
        %321 = vmatprep.subr.mxu0 0.0
        %322 = vmatpush1.msra.mxu0 0.0
        %323 = vmatprep.subr.mxu0 0.0
        %324 = vmatpush1.msra.mxu0 0.0
        %325 = vmatprep.subr.mxu0 0.0
        %326 = vmatpush1.msra.mxu0 0.0
        %327 = vmatprep.subr.mxu0 0.0
        %328 = vmatpush1.msra.mxu0 0.0
        %329 = vmatprep.subr.mxu0 0.0
        %330 = vmatpush1.msra.mxu0 0.0
        %331 = vmatprep.subr.mxu0 0.0
        %332 = vmatpush1.msra.mxu0 0.0
        %333 = vmatprep.subr.mxu0 0.0
        %334 = vmatpush1.msra.mxu0 0.0
        %335 = vmatprep.subr.mxu0 0.0
        %336 = vmatpush1.msra.mxu0 0.0
        %337 = vmatprep.subr.mxu0 0.0
        %338 = vmatpush1.msra.mxu0 0.0
        %339 = vmatprep.subr.mxu0 0.0
        %340 = vmatpush1.msra.mxu0 0.0
        %341 = vmatprep.subr.mxu0 0.0
        %342 = vmatpush1.msra.mxu0 0.0
        %343 = vmatprep.subr.mxu0 0.0
        %344 = vmatpush1.msra.mxu0 0.0
        %345 = vmatprep.subr.mxu0 0.0
        %346 = vmatpush1.msra.mxu0 0.0
        %347 = vmatprep.subr.mxu0 0.0
        %348 = vmatpush1.msra.mxu0 0.0
        %349 = vmatprep.subr.mxu0 0.0
        %350 = vmatpush1.msra.mxu0 0.0
        %351 = vmatprep.subr.mxu0 0.0
        %352 = vmatpush1.msra.mxu0 0.0
        %353 = vmatprep.subr.mxu0 0.0
        %354 = vmatpush1.msra.mxu0 0.0
        %355 = vmatprep.subr.mxu0 0.0
        %356 = vmatpush1.msra.mxu0 0.0
        %357 = vmatprep.subr.mxu0 0.0
        %358 = vmatpush1.msra.mxu0 0.0
        %359 = vmatprep.subr.mxu0 0.0
        %360 = vmatpush1.msra.mxu0 0.0
        %361 = vmatprep.subr.mxu0 0.0
        %362 = vmatpush1.msra.mxu0 0.0
        %363 = vmatprep.subr.mxu0 0.0
        %364 = vmatpush1.msra.mxu0 0.0
        %365 = vmatprep.subr.mxu0 0.0
        %366 = vmatpush1.msra.mxu0 0.0
        %367 = vmatprep.subr.mxu0 0.0
        %368 = vmatpush1.msra.mxu0 0.0
        %369 = vmatprep.subr.mxu0 0.0
        %370 = vmatpush1.msra.mxu0 0.0
        %371 = vmatprep.subr.mxu0 0.0
        %372 = vmatpush1.msra.mxu0 0.0
        %373 = vmatprep.mubr.f32.mxu0 0.0
        %374 = vmatmul.mubr.f32.gmra.mrb[0].mxu0 %v214
        %v375 = vpop.f32.mrb[0].mxu0
        %v376 = vadd.f32 0.0, %v375
        %v377 = vpop.f32.mrb[0].mxu0
        %378 = vmatprep.mubr.f32.mxu0 0.0
        %379 = vmatmul.mubr.f32.gmra.mrb[0].mxu0 %v217
        %v380 = vpop.f32.mrb[0].mxu0
        %v381 = vadd.f32 0.0, %v380
        %v382 = vpop.f32.mrb[0].mxu0
        %383 = vmatprep.mubr.f32.mxu0 0.0
        %384 = vmatmul.mubr.f32.gmra.mrb[0].mxu0 %v220
        %v385 = vpop.f32.mrb[0].mxu0
        %v386 = vadd.f32 0.0, %v385
        %v387 = vpop.f32.mrb[0].mxu0
        %388 = vmatprep.mubr.f32.mxu0 0.0
        %389 = vmatmul.mubr.f32.gmra.mrb[0].mxu0 %v223
        %v390 = vpop.f32.mrb[0].mxu0
        %v391 = vadd.f32 0.0, %v390
        %v392 = vpop.f32.mrb[0].mxu0
        %393 = vmatprep.mubr.f32.mxu0 0.0
        %394 = vmatmul.mubr.f32.gmra.mrb[0].mxu0 %v226
        %v395 = vpop.f32.mrb[0].mxu0
        %v396 = vadd.f32 0.0, %v395
        %v397 = vpop.f32.mrb[0].mxu0
        %398 = vmatprep.mubr.f32.mxu0 0.0
        %399 = vmatmul.mubr.f32.gmra.mrb[0].mxu0 %v229
        %v400 = vpop.f32.mrb[0].mxu0
        %v401 = vadd.f32 0.0, %v400
        %v402 = vpop.f32.mrb[0].mxu0
        %403 = vmatprep.mubr.f32.mxu0 0.0
        %404 = vmatmul.mubr.f32.gmra.mrb[0].mxu0 %v232
        %v405 = vpop.f32.mrb[0].mxu0
        %v406 = vadd.f32 0.0, %v405
        %v407 = vpop.f32.mrb[0].mxu0
        %408 = vmatprep.mubr.f32.mxu0 0.0
        %409 = vmatmul.mubr.f32.gmra.mrb[0].mxu0 %v235
        %v410 = vpop.f32.mrb[0].mxu0
        %v411 = vadd.f32 0.0, %v410
        %v412 = vpop.f32.mrb[0].mxu0
        %413 = vmatprep.mubr.f32.mxu0 0.0
        %414 = vmatmul.mubr.f32.gmra.mrb[0].mxu0 %v238
        %v415 = vpop.f32.mrb[0].mxu0
        %v416 = vadd.f32 0.0, %v415
        %v417 = vpop.f32.mrb[0].mxu0
        %418 = vmatprep.mubr.f32.mxu0 0.0
        %419 = vmatmul.mubr.f32.gmra.mrb[0].mxu0 %v241
        %v420 = vpop.f32.mrb[0].mxu0
        %v421 = vadd.f32 0.0, %v420
        %v422 = vpop.f32.mrb[0].mxu0
        %423 = vmatprep.mubr.f32.mxu0 0.0
        %424 = vmatmul.mubr.f32.gmra.mrb[0].mxu0 %v244
        %v425 = vpop.f32.mrb[0].mxu0
        %v426 = vadd.f32 0.0, %v425
        %v427 = vpop.f32.mrb[0].mxu0
        %428 = vmatprep.mubr.f32.mxu0 0.0
        %429 = vmatmul.mubr.f32.gmra.mrb[0].mxu0 %v247
        %v430 = vpop.f32.mrb[0].mxu0
        %v431 = vadd.f32 0.0, %v430
        %v432 = vpop.f32.mrb[0].mxu0
        %433 = vmatprep.mubr.f32.mxu0 0.0
        %434 = vmatmul.mubr.f32.gmra.mrb[0].mxu0 %v250
        %v435 = vpop.f32.mrb[0].mxu0
        %v436 = vadd.f32 0.0, %v435
        %v437 = vpop.f32.mrb[0].mxu0
        %438 = vmatprep.mubr.f32.mxu0 0.0
        %439 = vmatmul.mubr.f32.gmra.mrb[0].mxu0 %v253
        %v440 = vpop.f32.mrb[0].mxu0
        %v441 = vadd.f32 0.0, %v440
        %v442 = vpop.f32.mrb[0].mxu0
        %443 = vmatprep.mubr.f32.mxu0 0.0
        %444 = vmatmul.mubr.f32.gmra.mrb[0].mxu0 %v256
        %v445 = vpop.f32.mrb[0].mxu0
        %v446 = vadd.f32 0.0, %v445
        %v447 = vpop.f32.mrb[0].mxu0
        %448 = vmatprep.mubr.f32.mxu0 0.0
        %449 = vmatmul.mubr.f32.gmra.mrb[0].mxu0 %v259
        %v450 = vpop.f32.mrb[0].mxu0
        %v451 = vadd.f32 0.0, %v450
        %v452 = vpop.f32.mrb[0].mxu0
        %453 = vmatprep.mubr.f32.mxu0 0.0
        %454 = vmatmul.mubr.f32.gmra.mrb[0].mxu0 %v262
        %v455 = vpop.f32.mrb[0].mxu0
        %v456 = vadd.f32 0.0, %v455
        %v457 = vpop.f32.mrb[0].mxu0
        %458 = vmatprep.mubr.f32.mxu0 0.0
        %459 = vmatmul.mubr.f32.gmra.mrb[0].mxu0 %v265
        %v460 = vpop.f32.mrb[0].mxu0
        %v461 = vadd.f32 0.0, %v460
        %v462 = vpop.f32.mrb[0].mxu0
        %463 = vmatprep.mubr.f32.mxu0 0.0
        %464 = vmatmul.mubr.f32.gmra.mrb[0].mxu0 %v268
        %v465 = vpop.f32.mrb[0].mxu0
        %v466 = vadd.f32 0.0, %v465
        %v467 = vpop.f32.mrb[0].mxu0
        %468 = vmatprep.mubr.f32.mxu0 0.0
        %469 = vmatmul.mubr.f32.gmra.mrb[0].mxu0 %v271
        %v470 = vpop.f32.mrb[0].mxu0
        %v471 = vadd.f32 0.0, %v470
        %v472 = vpop.f32.mrb[0].mxu0
        %473 = vmatprep.mubr.f32.mxu0 0.0
        %474 = vmatmul.mubr.f32.gmra.mrb[0].mxu0 %v274
        %v475 = vpop.f32.mrb[0].mxu0
        %v476 = vadd.f32 0.0, %v475
        %v477 = vpop.f32.mrb[0].mxu0
        %478 = vmatprep.mubr.f32.mxu0 0.0
        %479 = vmatmul.mubr.f32.gmra.mrb[0].mxu0 %v277
        %v480 = vpop.f32.mrb[0].mxu0
        %v481 = vadd.f32 0.0, %v480
        %v482 = vpop.f32.mrb[0].mxu0
        %483 = vmatprep.mubr.f32.mxu0 0.0
        %484 = vmatmul.mubr.f32.gmra.mrb[0].mxu0 %v280
        %v485 = vpop.f32.mrb[0].mxu0
        %v486 = vadd.f32 0.0, %v485
        %v487 = vpop.f32.mrb[0].mxu0
        %488 = vmatprep.mubr.f32.mxu0 0.0
        %489 = vmatmul.mubr.f32.gmra.mrb[0].mxu0 %v283
        %v490 = vpop.f32.mrb[0].mxu0
        %v491 = vadd.f32 0.0, %v490
        %v492 = vpop.f32.mrb[0].mxu0
        %493 = vmatprep.mubr.f32.mxu0 0.0
        %494 = vmatmul.mubr.f32.gmra.mrb[0].mxu0 %v286
        %v495 = vpop.f32.mrb[0].mxu0
        %v496 = vadd.f32 0.0, %v495
        %v497 = vpop.f32.mrb[0].mxu0
        %498 = vmatprep.mubr.f32.mxu0 0.0
        %499 = vmatmul.mubr.f32.gmra.mrb[0].mxu0 %v289
        %v500 = vpop.f32.mrb[0].mxu0
        %v501 = vadd.f32 0.0, %v500
        %v502 = vpop.f32.mrb[0].mxu0
        %503 = vmatprep.mubr.f32.mxu0 0.0
        %504 = vmatmul.mubr.f32.gmra.mrb[0].mxu0 %v292
        %v505 = vpop.f32.mrb[0].mxu0
        %v506 = vadd.f32 0.0, %v505
        %v507 = vpop.f32.mrb[0].mxu0
        %508 = vmatprep.mubr.f32.mxu0 0.0
        %509 = vmatmul.mubr.f32.gmra.mrb[0].mxu0 %v295
        %v510 = vpop.f32.mrb[0].mxu0
        %v511 = vadd.f32 0.0, %v510
        %v512 = vpop.f32.mrb[0].mxu0
        %513 = vmatprep.mubr.f32.mxu0 0.0
        %514 = vmatmul.mubr.f32.gmra.mrb[0].mxu0 %v298
        %v515 = vpop.f32.mrb[0].mxu0
        %v516 = vadd.f32 0.0, %v515
        %v517 = vpop.f32.mrb[0].mxu0
        %518 = vmatprep.mubr.f32.mxu0 0.0
        %519 = vmatmul.mubr.f32.gmra.mrb[0].mxu0 %v301
        %v520 = vpop.f32.mrb[0].mxu0
        %v521 = vadd.f32 0.0, %v520
        %v522 = vpop.f32.mrb[0].mxu0
        %523 = vmatprep.mubr.f32.mxu0 0.0
        %524 = vmatmul.mubr.f32.gmra.mrb[0].mxu0 %v304
        %v525 = vpop.f32.mrb[0].mxu0
        %v526 = vadd.f32 0.0, %v525
        %v527 = vpop.f32.mrb[0].mxu0
        %528 = vmatprep.mubr.f32.mxu0 0.0
        %529 = vmatmul.mubr.f32.gmra.mrb[0].mxu0 %v307
        %v530 = vpop.f32.mrb[0].mxu0
        %v531 = vadd.f32 0.0, %v530
        %v532 = vpop.f32.mrb[0].mxu0
        %533 = vdwg.mxu0
        %534 = vst [vmem:[%s164] sm:$0xff] %v376
        %535 = vst [vmem:[%s164 + $0x8] sm:$0xff] %v381
        %536 = vst [vmem:[%s164 + $0x10] sm:$0xff] %v386
        %537 = vst [vmem:[%s164 + $0x18] sm:$0xff] %v391
        %538 = vst [vmem:[%s164 + $0x20] sm:$0xff] %v396
        %539 = vst [vmem:[%s164 + $0x28] sm:$0xff] %v401
        %540 = vst [vmem:[%s164 + $0x30] sm:$0xff] %v406
        %541 = vst [vmem:[%s164 + $0x38] sm:$0xff] %v411
        %542 = vst [vmem:[%s164 + $0x40] sm:$0xff] %v416
        %543 = vst [vmem:[%s164 + $0x48] sm:$0xff] %v421
        %544 = vst [vmem:[%s164 + $0x50] sm:$0xff] %v426
        %545 = vst [vmem:[%s164 + $0x58] sm:$0xff] %v431
        %546 = vst [vmem:[%s164 + $0x60] sm:$0xff] %v436
        %547 = vst [vmem:[%s164 + $0x68] sm:$0xff] %v441
        %548 = vst [vmem:[%s164 + $0x70] sm:$0xff] %v446
        %549 = vst [vmem:[%s164 + $0x78] sm:$0xff] %v451
        %550 = vst [vmem:[%s164 + $0x80] sm:$0xff] %v456
        %551 = vst [vmem:[%s164 + $0x88] sm:$0xff] %v461
        %552 = vst [vmem:[%s164 + $0x90] sm:$0xff] %v466
        %553 = vst [vmem:[%s164 + $0x98] sm:$0xff] %v471
        %554 = vst [vmem:[%s164 + $0xa0] sm:$0xff] %v476
        %555 = vst [vmem:[%s164 + $0xa8] sm:$0xff] %v481
        %556 = vst [vmem:[%s164 + $0xb0] sm:$0xff] %v486
        %557 = vst [vmem:[%s164 + $0xb8] sm:$0xff] %v491
        %558 = vst [vmem:[%s164 + $0xc0] sm:$0xff] %v496
        %559 = vst [vmem:[%s164 + $0xc8] sm:$0xff] %v501
        %560 = vst [vmem:[%s164 + $0xd0] sm:$0xff] %v506
        %561 = vst [vmem:[%s164 + $0xd8] sm:$0xff] %v511
        %562 = vst [vmem:[%s164 + $0xe0] sm:$0xff] %v516
        %563 = vst [vmem:[%s164 + $0xe8] sm:$0xff] %v521
        %564 = vst [vmem:[%s164 + $0xf0] sm:$0xff] %v526
        %565 = vst [vmem:[%s164 + $0xf8] sm:$0xff] %v531
        %s566 = sand.u32 %s90, 1
        %s567 = scalar_lea.sflag [#allocation3], %s566
        %s568 = sand.u32 %s90, 1
        %s569 = smul.addr %s568, 256
        %s570 = scalar_lea.vmem [#allocation2], %s569
        // Predicated region
        $region29: #{tpu_custom_call.1} parent=27 // pred_check
          %p571 = pneg %p100
        $region30: #{tpu_custom_call.1} parent=27 // pred_check_branch
          %573 = sbr.rel (%p571) target = $region32
        $region31: #{tpu_custom_call.1} parent=27 // pred_region
          %s574 = smul.u32 32, %s20
          %s576 = ssub.s32 4096, 4096
          %577 = vsyncadd %s567, %s576
          %s578 = sadd.s32 %s21, %s574
          %s579 = smul.addr %s578, 128
          %s580 = scalar_lea.hbm %s2, %s579
          %s581 = sshll.u32 %s570, 4
          %s582 = int_to_ptr.vmem [resolvable:$true] %s581
          %587 = dma.vmem_to_hbm [thread:$0]  %s582, 4096, %s580, %s567, 128, 128, 8
        $region32: #{tpu_custom_call.1} parent=27 // pred_fallthru
          _
      $region28: #{tpu_custom_call.1} parent=5 // pred_fallthru
        _
      %p588 = scmp.le.s32.totalorder 2, %s11
      // Predicated region
      $region33: #{tpu_custom_call.1} parent=5 // pred_check
        %p589 = pneg %p588
      $region34: #{tpu_custom_call.1} parent=5 // pred_check_branch
        %591 = sbr.rel (%p589) target = $region36
      $region35: #{tpu_custom_call.1} parent=5 // pred_region
        %s592 = ssub.s32 %s11, 2
        // Predicated region
        $region37: #{tpu_custom_call.1} parent=35 // pred_check
          %p593 = pneg %p106
        $region38: #{tpu_custom_call.1} parent=35 // pred_check_branch
          %595 = sbr.rel (%p593) target = $region40
        $region39: #{tpu_custom_call.1} parent=35 // pred_region
          %s596 = sand.u32 %s91, 1
          %s597 = scalar_lea.sflag [#allocation3], %s596
          %s598 = sand.u32 %s91, 1
          %s599 = smul.addr %s598, 256
          %s600 = scalar_lea.vmem [#allocation2], %s599
          %601 = dma.done %s597, 4096
        $region40: #{tpu_custom_call.1} parent=35 // pred_fallthru
          _
      $region36: #{tpu_custom_call.1} parent=5 // pred_fallthru
        _
    $region6: #{tpu_custom_call.1} parent=1 // loop_footer
      %s15 = sadd.s32 1, %s11
    $region7: #{tpu_custom_call.1} parent=1 // loop_footer_branch
      %10 = sbr.rel target = $region3
    $region8: #{tpu_custom_call.1} parent=1 // loop_exit
      _
    %602 = vsyncpa [#allocation3], 1
    %s603 = scalar_lea.sflag [#allocation3], 1
    %604 = vsyncpa %s603, 1

</llo_original>
